<compile_context>
chip_gen: v7x
topology: tpu7x:2x2x1
jax: 0.10.0
libtpu: 0.0.40
codegen_flags: <defaults>
</compile_context>

<pallas_src>
import functools

import jax
import jax.numpy as jnp
from jax.experimental import pallas as pl
from jax.experimental.pallas import tpu as pltpu


# Lane widths tried for the flattened lane-dense slab (largest first; all >=128
# so stores stay unmasked / lane-dense).
_LANE_WIDTHS = (512, 256, 128)

# Per-operand bytes per grid step.  4 MiB keeps per-step overhead (~0.35 us)
# under ~10% on v7x's 3.2 TB/s HBM; 3 operands x 2 buffers x 4 MiB = 24 MiB in
# flight fits the 32 MiB vmem pin and v7x's 64 MiB physical VMEM.
_TARGET_TILE_BYTES = 4 * 1024 * 1024

# At or below this per-operand size the whole slab is one block: splitting a
# <=1 MiB stream across v7x's two TCs saves less than one grid-step overhead.
_SINGLE_BLOCK_MAX_BYTES = 1 * 1024 * 1024

# Below this many elements (or for non-128-aligned flat sizes) use the fused XLA
# elementwise fallback.  Kept small so the demo shapes below still exercise the
# Pallas path; production could raise this to ~16-32K elements.
_JNP_FALLBACK_MAX_ELEMS = 1024

# Minimum sublane multiple for the row (second-minor) block dim, by itemsize.
_SUBLANE_MULT = {4: 8, 2: 16, 1: 32}


def _baz_kernel(a_ref, b_ref, o_ref, *, x):
    # x is a weak-typed Python-float closure constant: keeps the ref dtype and
    # avoids an SMEM operand / per-step scalar load.
    # TODO(synk): if self.x ever becomes a learned/traced tensor, pass it as a
    # scalar (SMEM/prefetch) operand instead of baking it at trace time.
    o_ref[...] = a_ref[...] + b_ref[...] * x


def _round_up(v, m):
    return ((v + m - 1) // m) * m


def baz_forward(a, b, x_scalar):
    """Computes a + b * x_scalar (Baz.forward) with a Pallas TPU kernel.

    a, b: arrays of identical shape/dtype (e.g. NCHW float32).
    x_scalar: Python float (the module's static self.x).
    """
    assert a.shape == b.shape and a.dtype == b.dtype
    orig_shape = a.shape
    dtype = a.dtype
    n = a.size
    itemsize = jnp.dtype(dtype).itemsize
    x = float(x_scalar)

    # Fallback: ragged (non-128-aligned) or tiny sizes.  A fused XLA elementwise
    # is already at the HBM roofline for this op and avoids the pad/slice copies
    # that would multiply the traffic of a BW-bound kernel.
    lane = next((w for w in _LANE_WIDTHS if n % w == 0), None)
    if lane is None or n <= _JNP_FALLBACK_MAX_ELEMS:
        return a + b * x

    rows = n // lane
    # Lane-dense 2-D slab.  Contiguous reshapes are layout-preserving bitcasts in
    # XLA -> no extra HBM traffic (unlike the previous pad + output-slice path).
    a2 = a.reshape(rows, lane)
    b2 = b.reshape(rows, lane)

    sub = _SUBLANE_MULT.get(itemsize, 8)
    per_operand_bytes = n * itemsize
    if per_operand_bytes <= _SINGLE_BLOCK_MAX_BYTES:
        # Single block covering the whole slab (row dim equals full array dim,
        # so any row count is legal): one DMA-in / VPU pass / DMA-out.
        tile_rows = rows
    else:
        steps = max(2, pl.cdiv(per_operand_bytes, _TARGET_TILE_BYTES))
        if steps % 2:
            steps += 1  # even step count: no 2-TC load imbalance on v7x
        tile_rows = min(rows, _round_up(pl.cdiv(rows, steps), sub))

    grid = (pl.cdiv(rows, tile_rows),)
    blk = (tile_rows, lane)
    kernel = functools.partial(_baz_kernel, x=x)

    out2 = pl.pallas_call(
        kernel,
        out_shape=jax.ShapeDtypeStruct((rows, lane), dtype),
        grid_spec=pltpu.PrefetchScalarGridSpec(
            num_scalar_prefetch=0,
            grid=grid,
            in_specs=[
                pl.BlockSpec(blk, lambda i: (i, 0)),  # a tile
                pl.BlockSpec(blk, lambda i: (i, 0)),  # b tile
            ],
            out_specs=pl.BlockSpec(blk, lambda i: (i, 0)),
        ),
        compiler_params=pltpu.CompilerParams(
            dimension_semantics=("parallel",),
            # 3 operands x 2 buffers x <=4 MiB tiles = <=24 MiB in flight; safe on
            # v5e/v6e (128 MiB physical) and v7x (64 MiB physical).
            vmem_limit_bytes=32 * 1024 * 1024,
        ),
    )(a2, b2)

    # Partial last row-block (rows % tile_rows != 0) is handled by Pallas's
    # masked writeback; no trailing slice needed.
    return out2.reshape(orig_shape)


if __name__ == "__main__":
    # Deterministic "parameter": the module's self.x (a static scalar multiplier).
    X_VALUE = 2.5

    key = jax.random.PRNGKey(0)
    ka, kb, kc, kd, ke, kf = jax.random.split(key, 6)

    # 1) Small NCHW shape (single-block Pallas path: 2048 elems -> (4, 512) slab).
    shape = (2, 4, 16, 16)
    a = jax.random.normal(ka, shape, dtype=jnp.float32)
    b = jax.random.normal(kb, shape, dtype=jnp.float32)
    out = jax.block_until_ready(baz_forward(a, b, X_VALUE))
    ref = a + b * X_VALUE
    assert out.shape == shape and out.dtype == jnp.float32
    assert jnp.allclose(out, ref, atol=1e-6, rtol=1e-6), "mismatch (small / single block)"

    # 2) Medium shape exercising the gridded path with a PARTIAL last row-block
    #    (525 rows, tile 264 rows -> grid 2, last block masked on write).
    shape_med = (5, 6, 70, 128)
    a_m = jax.random.normal(kc, shape_med, dtype=jnp.float32)
    b_m = jax.random.normal(kd, shape_med, dtype=jnp.float32)
    out_m = jax.block_until_ready(baz_forward(a_m, b_m, X_VALUE))
    ref_m = a_m + b_m * X_VALUE
    assert out_m.shape == shape_med
    assert jnp.allclose(out_m, ref_m, atol=1e-6, rtol=1e-6), "mismatch (partial block)"

    # 3) Larger shape: multi-step parallel grid (even step count, dual-TC on v7x).
    shape_big = (8, 16, 128, 96)  # 1,572,864 elems = 6 MiB/operand f32 -> 2 steps
    a_b = jax.random.normal(ke, shape_big, dtype=jnp.float32)
    b_b = jax.random.normal(kf, shape_big, dtype=jnp.float32)
    out_b = jax.block_until_ready(baz_forward(a_b, b_b, X_VALUE))
    ref_b = a_b + b_b * X_VALUE
    assert out_b.shape == shape_big
    assert jnp.allclose(out_b, ref_b, atol=1e-6, rtol=1e-6), "mismatch (tiled)"

    # 4) Ragged flat size -> documented fused-XLA fallback path.
    shape_rag = (2, 3, 5, 7)
    a_r = jax.random.normal(ka, shape_rag, dtype=jnp.float32)
    b_r = jax.random.normal(kb, shape_rag, dtype=jnp.float32)
    out_r = jax.block_until_ready(baz_forward(a_r, b_r, X_VALUE))
    assert jnp.allclose(out_r, a_r + b_r * X_VALUE, atol=1e-6, rtol=1e-6), "mismatch (ragged)"

    print("KERNEL_OK")
</pallas_src>

<mosaic_0001>
module attributes {stable_mosaic.version = 11 : i64} {
  func.func @_baz_kernel(%arg0: i32, %arg1: memref<4x512xf32, #tpu.memory_space<vmem>>, %arg2: memref<4x512xf32, #tpu.memory_space<vmem>>, %arg3: memref<4x512xf32, #tpu.memory_space<vmem>>) attributes {dimension_semantics = [#tpu.dimension_semantics<parallel>], iteration_bounds = array<i64: 1>, scalar_prefetch = 0 : i64, scratch_operands = 0 : i64, tpu.core_type = #tpu.core_type<tc>, window_params = [{transform_indices = @transform_0, window_bounds = array<i64: 4, 512>}, {transform_indices = @transform_1, window_bounds = array<i64: 4, 512>}, {transform_indices = @transform_2, window_bounds = array<i64: 4, 512>}]} {
    %c0 = arith.constant 0 : index
    %c0_0 = arith.constant 0 : index
    %0 = vector.load %arg1[%c0, %c0_0] : memref<4x512xf32, #tpu.memory_space<vmem>>, vector<4x512xf32>
    %c0_1 = arith.constant 0 : index
    %c0_2 = arith.constant 0 : index
    %1 = vector.load %arg2[%c0_1, %c0_2] : memref<4x512xf32, #tpu.memory_space<vmem>>, vector<4x512xf32>
    %cst = arith.constant 2.500000e+00 : f32
    %2 = vector.broadcast %cst : f32 to vector<4x512xf32>
    %3 = arith.mulf %1, %2 : vector<4x512xf32>
    %4 = arith.addf %0, %3 : vector<4x512xf32>
    %c0_3 = arith.constant 0 : index
    %c0_4 = arith.constant 0 : index
    %5 = vector.load %arg3[%c0_3, %c0_4] : memref<4x512xf32, #tpu.memory_space<vmem>>, vector<4x512xf32>
    tpu.vector_store %arg3[%c0_3, %c0_4], %4 {strides = array<i32>} : memref<4x512xf32, #tpu.memory_space<vmem>>, vector<4x512xf32>,
    return
  }
  func.func @transform_0(%arg0: i32) -> (i32, i32) {
    %c0_i32 = arith.constant 0 : i32
    %c0_i32_0 = arith.constant 0 : i32
    return %arg0, %c0_i32 : i32, i32
  }
  func.func @transform_1(%arg0: i32) -> (i32, i32) {
    %c0_i32 = arith.constant 0 : i32
    %c0_i32_0 = arith.constant 0 : i32
    return %arg0, %c0_i32 : i32, i32
  }
  func.func @transform_2(%arg0: i32) -> (i32, i32) {
    %c0_i32 = arith.constant 0 : i32
    %c0_i32_0 = arith.constant 0 : i32
    return %arg0, %c0_i32 : i32, i32
  }
}

</mosaic_0001>

<llo_original>
// kernel: tpu_custom_call.1
$region0: #{tpu_custom_call.1}
  #allocation0 [shape = 'u32[]', space=smem, size = 0x4, offset = 0x4, fixed_abs, tag = 'smem constant byte address 0x4 - core index']
  #allocation1 [shape = 'u32[144,128]{1,0:T(1,128)}', space=vmem, size = 0x12000, scoped, tag = 'internal scratch']
  %s0 = inlined_call_operand.hbm [shape: f32[4,512], index: 0, kind: input, shape index: {}]
  %s1 = inlined_call_operand.hbm [shape: f32[4,512], index: 1, kind: input, shape index: {}]
  %s2 = inlined_call_operand.hbm [shape: f32[4,512], index: 2, kind: output, shape index: {}]
  %s3 = sld [smem:[#allocation0]]
  $region26: #{tpu_custom_call.1} parent=0
    _
  %s5 = ssub.s32 1, %s3
  %s6 = scalar_select 0, %s5, %s3
  $region1: #{tpu_custom_call.1} parent=0
    #allocation2 [shape = 'u8[8192]{0}', space=vmem, size = 0x2000, scoped, tag = 'input window, operand 0, single buffered']
    #allocation3 [shape = 's32[1]{0}', space=sflag, size = 0x4, scoped, tag = 'scoped memory for tpu_custom_call.1']
    #allocation4 [shape = 's32[1]{0}', space=sflag, size = 0x4, scoped, tag = 'scoped memory for tpu_custom_call.1']
    #allocation5 [shape = 'u8[8192]{0}', space=vmem, size = 0x2000, scoped, tag = 'input window, operand 1, single buffered']
    #allocation6 [shape = 's32[1]{0}', space=sflag, size = 0x4, scoped, tag = 'scoped memory for tpu_custom_call.1']
    #allocation7 [shape = 'u8[8192]{0}', space=vmem, size = 0x2000, scoped, tag = 'output window, operand 0, single buffered']
    %7 = vsyncpa [#allocation3], 0
    %8 = vsyncpa [#allocation6], 0
    %9 = vsyncpa [#allocation4], 0
    // Predicated region
    $region2: #{tpu_custom_call.1} parent=1 // pred_check
      _
    $region3: #{tpu_custom_call.1} parent=1 // pred_check_branch
      %11 = sbr.rel (0) target = $region5
    $region4: #{tpu_custom_call.1} parent=1 // pred_region
      %s13 = ssub.s32 256, 256
      %14 = vsyncadd [#allocation3], %s13
      %s16 = sshll.u32 [#allocation2], 4
      %s17 = int_to_ptr.vmem [resolvable:$true] %s16
      %19 = dma.hbm_to_vmem [thread:$0]  %s0, 256, %s17, [#allocation3]
    $region5: #{tpu_custom_call.1} parent=1 // pred_fallthru
      _
    // Predicated region
    $region6: #{tpu_custom_call.1} parent=1 // pred_check
      _
    $region7: #{tpu_custom_call.1} parent=1 // pred_check_branch
      %21 = sbr.rel (0) target = $region9
    $region8: #{tpu_custom_call.1} parent=1 // pred_region
      %s23 = ssub.s32 256, 256
      %24 = vsyncadd [#allocation6], %s23
      %s26 = sshll.u32 [#allocation5], 4
      %s27 = int_to_ptr.vmem [resolvable:$true] %s26
      %29 = dma.hbm_to_vmem [thread:$0]  %s1, 256, %s27, [#allocation6]
    $region9: #{tpu_custom_call.1} parent=1 // pred_fallthru
      _
    // Predicated region
    $region10: #{tpu_custom_call.1} parent=1 // pred_check
      _
    $region11: #{tpu_custom_call.1} parent=1 // pred_check_branch
      %31 = sbr.rel (0) target = $region13
    $region12: #{tpu_custom_call.1} parent=1 // pred_region
      %32 = dma.done [#allocation3], 256
    $region13: #{tpu_custom_call.1} parent=1 // pred_fallthru
      _
    // Predicated region
    $region14: #{tpu_custom_call.1} parent=1 // pred_check
      _
    $region15: #{tpu_custom_call.1} parent=1 // pred_check_branch
      %34 = sbr.rel (0) target = $region17
    $region16: #{tpu_custom_call.1} parent=1 // pred_region
      %35 = dma.done [#allocation6], 256
    $region17: #{tpu_custom_call.1} parent=1 // pred_fallthru
      _
    %v36 = vld [vmem:[#allocation2] sm:$0xff]
    %v37 = vld [vmem:[#allocation2 + $0x8] sm:$0xff]
    %v38 = vld [vmem:[#allocation5] sm:$0xff]
    %v39 = vld [vmem:[#allocation5 + $0x8] sm:$0xff]
    %v40 = vmul.f32 %v38, 2.5
    %v41 = vmul.f32 %v39, 2.5
    %v42 = vadd.f32 %v36, %v40
    %v43 = vadd.f32 %v37, %v41
    %44 = vst [vmem:[#allocation7] sm:$0xff] %v42
    %45 = vst [vmem:[#allocation7 + $0x8] sm:$0xff] %v43
    // Predicated region
    $region18: #{tpu_custom_call.1} parent=1 // pred_check
      _
    $region19: #{tpu_custom_call.1} parent=1 // pred_check_branch
      %47 = sbr.rel (0) target = $region21
    $region20: #{tpu_custom_call.1} parent=1 // pred_region
      %s49 = ssub.s32 256, 256
      %50 = vsyncadd [#allocation4], %s49
      %s52 = sshll.u32 [#allocation7], 4
      %s53 = int_to_ptr.vmem [resolvable:$true] %s52
      %55 = dma.vmem_to_hbm [thread:$0]  %s53, 256, %s2, [#allocation4]
    $region21: #{tpu_custom_call.1} parent=1 // pred_fallthru
      _
    // Predicated region
    $region22: #{tpu_custom_call.1} parent=1 // pred_check
      _
    $region23: #{tpu_custom_call.1} parent=1 // pred_check_branch
      %57 = sbr.rel (0) target = $region25
    $region24: #{tpu_custom_call.1} parent=1 // pred_region
      %58 = dma.done [#allocation4], 256
    $region25: #{tpu_custom_call.1} parent=1 // pred_fallthru
      _
    %59 = vsyncpa [#allocation3], 1
    %60 = vsyncpa [#allocation6], 1
    %61 = vsyncpa [#allocation4], 1

</llo_original>
